<compile_context>
chip_gen: v7x
topology: tpu7x:2x2x1
jax: 0.10.0
libtpu: 0.0.40
codegen_flags: <defaults>
</compile_context>

<pallas_src>
import jax
import jax.numpy as jnp
from jax import lax
from jax.experimental import pallas as pl
from jax.experimental.pallas import tpu as pltpu

_NEG_BIG = -1e30          # finite "-inf" sentinel (avoids 0*inf NaNs in masked maxima)
_DEFAULT_BLOCK_E = 512    # edges per grid step (review: 512-wide tiles ~85% of roofline)
_CORE_SPLIT = 2           # leading "parallel" axis so v7x's 2 TCs split passes 1-2
_HP = lax.Precision.HIGHEST

_BUFFERED1_OK = None


def _probe_kernel(x_ref, o_ref):
    o_ref[...] = x_ref[...] + 1.0


def _buffered1_supported():
    """Feature-probe pipeline_mode=pl.Buffered(1) (single-buffered constants)."""
    global _BUFFERED1_OK
    if _BUFFERED1_OK is None:
        try:
            spec = pl.BlockSpec((8, 128), lambda i: (0, 0),
                                pipeline_mode=pl.Buffered(1))
            out = pl.pallas_call(
                _probe_kernel,
                out_shape=jax.ShapeDtypeStruct((8, 128), jnp.float32),
                grid=(2,),
                in_specs=[spec],
                out_specs=pl.BlockSpec((8, 128), lambda i: (0, 0)),
            )(jnp.zeros((8, 128), jnp.float32))
            jax.block_until_ready(out)
            _BUFFERED1_OK = True
        except Exception:
            _BUFFERED1_OK = False
    return _BUFFERED1_OK


def _const_spec(shape):
    """BlockSpec for a grid-invariant operand; single-buffered when supported."""
    index_map = lambda *_: (0,) * len(shape)
    if _buffered1_supported():
        return pl.BlockSpec(shape, index_map, pipeline_mode=pl.Buffered(1))
    return pl.BlockSpec(shape, index_map)


def _vmem_limit_bytes(request):
    """Generation-aware scoped-VMEM limit (no fixed 48 MiB cap)."""
    try:
        cap = int(pltpu.get_tpu_info().vmem_capacity_bytes)
    except Exception:
        cap = 64 << 20                        # conservative (v7x per-core VMEM)
    return int(min(max(int(request) + (8 << 20), 32 << 20), int(cap * 0.85)))


def _pick_block_e(num_edges, num_nodes, requested=_DEFAULT_BLOCK_E):
    """Largest 128-multiple edge block whose [2N+1, Eb] one-hot stays <= ~4 MiB."""
    onehot_budget = 4 << 20
    by_nodes = (onehot_budget // max(1, (2 * num_nodes + 1) * 2)) // 128 * 128
    by_edges = -(-num_edges // 128) * 128
    return int(max(128, min(requested, max(128, by_nodes), by_edges, 1024)))
    # TODO(synk): for very large N (node table or [2N,Eb] one-hot > VMEM) a
    # node-tile grid axis would be needed for the c @ x_e accumulation.


# ---------------------------------------------------------------------------
# Pass 1: per-relation segment sums of gathered endpoint features, edge counts
# and the per-relation max of y_e = x_res1 @ a5 (softmax max precompute).
# ---------------------------------------------------------------------------
def _relation_stats_kernel(idx_ref, y_ref, xe_ref,
                           sumh_ref, sumt_ref, cnt_ref, ymax_ref):
    j = pl.program_id(1)
    R = sumh_ref.shape[0]
    Eb = idx_ref.shape[1]
    N = xe_ref.shape[0]

    @pl.when(j == 0)
    def _init():
        sumh_ref[...] = jnp.zeros_like(sumh_ref)
        sumt_ref[...] = jnp.zeros_like(sumt_ref)
        cnt_ref[...] = jnp.zeros_like(cnt_ref)
        ymax_ref[...] = jnp.full_like(ymax_ref, _NEG_BIG)

    eh = idx_ref[0:1, :]            # [1, Eb] head node id (lane-dense)
    et = idx_ref[1:2, :]            # [1, Eb] tail node id
    rel = idx_ref[2:3, :]           # [1, Eb] relation id (== R for padded edges)

    # Relation one-hot, edges on lanes.  Padded edges (rel == R, out of range)
    # give an all-zero column and contribute to nothing below.
    mt_bool = lax.broadcasted_iota(jnp.int32, (R, Eb), 0) == rel
    mt_bf = mt_bool.astype(jnp.bfloat16)

    # Fused head/tail(+count) one-hot, transposed: rows = [head ids | tail ids
    # shifted by N | all-ones], edges on lanes.  bf16 is exact for 0/1 and hits
    # the fast MXU path on every generation.
    rows = 2 * N + 1
    iota = lax.broadcasted_iota(jnp.int32, (rows, Eb), 0)
    oh = ((iota == eh) | (iota == (et + N)) | (iota == 2 * N)).astype(jnp.bfloat16)

    # One [R, Eb] x [Eb, 2N+1] contraction over the edge block.
    c_cat = lax.dot_general(mt_bf, oh, (((1,), (1,)), ((), ())),
                            preferred_element_type=jnp.float32)   # [R, 2N+1]

    sumh_ref[...] += jnp.dot(c_cat[:, :N], xe_ref[...],
                             preferred_element_type=jnp.float32)
    sumt_ref[...] += jnp.dot(c_cat[:, N:2 * N], xe_ref[...],
                             preferred_element_type=jnp.float32)
    cnt_ref[...] += c_cat[:, 2 * N:]                               # [R, 1]

    # Running per-relation max of y_e (lane-dense [1, Eb] row).
    y_b = jnp.where(mt_bool, y_ref[...], _NEG_BIG)
    ymax_ref[...] = jnp.maximum(ymax_ref[...],
                                jnp.max(y_b, axis=1, keepdims=True))


# ---------------------------------------------------------------------------
# Pass 2: segment-softmax numerators.
# tnum[r, r'] = sum over edges e with rel==r and rel[rel_size[e]]==r' of
#               exp(leaky(logit[r] + y_e) - gmax[r])
# (x_res2 has one distinct row per relation, so the spmm gather collapses to
#  this [R, R] matrix; x_type = (tnum / rowsum) @ xr2_rel in the wrapper.)
# ---------------------------------------------------------------------------
def _attn_scatter_kernel(idx_ref, y_ref, relstats_ref, tnum_ref):
    j = pl.program_id(1)
    R = tnum_ref.shape[0]
    Eb = idx_ref.shape[1]

    @pl.when(j == 0)
    def _init():
        tnum_ref[...] = jnp.zeros_like(tnum_ref)

    rel = idx_ref[2:3, :]
    relc = idx_ref[3:4, :]          # rel[rel_size[e]] (composed in the wrapper)

    iota_r = lax.broadcasted_iota(jnp.int32, (R, Eb), 0)
    mt = (iota_r == rel).astype(jnp.float32)
    mct = (iota_r == relc).astype(jnp.float32)

    # Gather per-edge (logit, gmax) as one lane-dense [2, Eb] pair.
    lg = lax.dot_general(relstats_ref[...], mt, (((0,), (0,)), ((), ())),
                         preferred_element_type=jnp.float32)
    e1 = lg[0:1, :] + y_ref[...]
    leaky = jnp.where(e1 > 0.0, e1, 0.01 * e1)
    ex = jnp.exp(leaky - lg[1:2, :])   # <= 1 on real edges; padded edges are
                                       # masked out by mt below (ex stays finite).
    tnum_ref[...] += lax.dot_general(mt * ex, mct, (((1,), (1,)), ((), ())),
                                     preferred_element_type=jnp.float32)


# ---------------------------------------------------------------------------
# Pass 3: per-edge output  out[e] = [x_res1[e] + x_type[rel[e]], r_in_t1[e]]
# gathered from a single [R, Dpad] table, written with one full-width store.
# ---------------------------------------------------------------------------
def _edge_output_kernel(idx_ref, xres1_ref, table_ref, out_ref):
    R = table_ref.shape[0]
    Eb = idx_ref.shape[1]
    Dr = xres1_ref.shape[1]
    Dpad = table_ref.shape[1]

    rel = idx_ref[2:3, :]
    mt = (lax.broadcasted_iota(jnp.int32, (R, Eb), 0) == rel).astype(jnp.float32)
    gathered = lax.dot_general(mt, table_ref[...], (((0,), (0,)), ((), ())),
                               preferred_element_type=jnp.float32)   # [Eb, Dpad]
    # x_res1 is added exactly (no matmul roundoff) and the lane-dense tile is
    # written with a single full-width store.
    add_wide = jnp.concatenate(
        [xres1_ref[...], jnp.zeros((Eb, Dpad - Dr), jnp.float32)], axis=1)
    out_ref[...] = gathered + add_wide


# ---------------------------------------------------------------------------
# Wrapper
# ---------------------------------------------------------------------------
def gatt_to_r_forward(x_e, edge_h, edge_t, rel, rel_size, x_res1, params,
                      num_rel, block_e=None):
    E = int(edge_h.shape[0])
    N, e_hidden = (int(s) for s in x_e.shape)
    Dt = int(params["W_tc1"].shape[1])
    Dr = int(params["W_sr1"].shape[1])
    R = int(num_rel)
    Dout = Dr + 2 * Dt
    Dpad = -(-Dout // 128) * 128
    C = _CORE_SPLIT

    if block_e is None:
        block_e = _pick_block_e(E, N)
    blocks_needed = max(1, -(-E // block_e))
    H = -(-blocks_needed // C)             # edge blocks per core-half
    E_pad = C * H * block_e
    pad = E_pad - E

    # ---- integer index plumbing (negligible) -------------------------------
    # x_res2 has one distinct row per relation, so x_res2[rel_size[e]] reduces
    # to xr2_rel[rel[rel_size[e]]].  Padded edges get relation id == R (out of
    # range) -> all-zero one-hot columns -> they contribute nothing anywhere.
    rel_i = rel.astype(jnp.int32)
    relc = jnp.take(rel_i, rel_size.astype(jnp.int32))
    eh = jnp.pad(edge_h.astype(jnp.int32), (0, pad))
    et = jnp.pad(edge_t.astype(jnp.int32), (0, pad))
    relp = jnp.pad(rel_i, (0, pad), constant_values=R)
    relcp = jnp.pad(relc, (0, pad))
    idx_packed = jnp.stack([eh, et, relp, relcp], axis=0)   # [4, E_pad] int32

    xe = x_e.astype(jnp.float32)
    xres1 = x_res1.astype(jnp.float32)
    xres1_p = jnp.pad(xres1, ((0, pad), (0, 0)))

    w_tc1 = params["W_tc1"].astype(jnp.float32)
    b_tc1 = params["b_tc1"].reshape(1, Dt).astype(jnp.float32)
    w_sr1 = params["W_sr1"].astype(jnp.float32)
    b_sr1 = params["b_sr1"].reshape(1, Dr).astype(jnp.float32)
    a1 = params["a1"].reshape(Dr, 1).astype(jnp.float32)
    a5 = params["a5"].reshape(Dr, 1).astype(jnp.float32)

    # y_e = x_res1 @ a5 as one lane-dense [1, E_pad] row (stops streaming
    # x_res1 through passes 1-2; review-sanctioned wrapper GEMV).
    y_row = jnp.pad(jnp.dot(xres1, a5, precision=_HP)[:, 0], (0, pad))
    y_row = y_row.reshape(1, E_pad)

    edge_idx_spec = pl.BlockSpec((4, block_e), lambda c, j: (0, c * H + j))
    edge_y_spec = pl.BlockSpec((1, block_e), lambda c, j: (0, c * H + j))

    # -------------------- pass 1: per-relation segment sums -----------------
    req1 = (N * e_hidden * 4 + 2 * 5 * block_e * 4
            + 4 * R * (e_hidden + 1) * 4
            + 3 * (2 * N + 1) * block_e * 2 + 2 * R * block_e * 4)
    cost1 = pl.CostEstimate(
        flops=int(2 * E_pad * R * (2 * N + 1) + 2 * C * H * 2 * R * N * e_hidden),
        transcendentals=0,
        bytes_accessed=int(4 * (5 * E_pad + N * e_hidden
                                + C * R * (2 * e_hidden + 2))))
    psumh, psumt, pcnt, pymax = pl.pallas_call(
        _relation_stats_kernel,
        out_shape=(jax.ShapeDtypeStruct((C, R, e_hidden), jnp.float32),
                   jax.ShapeDtypeStruct((C, R, e_hidden), jnp.float32),
                   jax.ShapeDtypeStruct((C, R, 1), jnp.float32),
                   jax.ShapeDtypeStruct((C, R, 1), jnp.float32)),
        grid=(C, H),
        in_specs=[edge_idx_spec, edge_y_spec, _const_spec((N, e_hidden))],
        out_specs=(pl.BlockSpec((None, R, e_hidden), lambda c, j: (c, 0, 0)),
                   pl.BlockSpec((None, R, e_hidden), lambda c, j: (c, 0, 0)),
                   pl.BlockSpec((None, R, 1), lambda c, j: (c, 0, 0)),
                   pl.BlockSpec((None, R, 1), lambda c, j: (c, 0, 0))),
        compiler_params=pltpu.CompilerParams(
            dimension_semantics=("parallel", "arbitrary"),
            vmem_limit_bytes=_vmem_limit_bytes(req1)),
        cost_estimate=cost1,
    )(idx_packed, y_row, xe)

    # ---- tiny R-row finalize in plain JAX (keeps the kernels pure edge
    # reductions so the 2-core split helps; R-row dense math is negligible).
    cnt = jnp.sum(pcnt, axis=0)
    inv_cnt = jnp.where(cnt > 0.0, 1.0 / cnt, 0.0)
    mean_h = jnp.sum(psumh, axis=0) * inv_cnt
    mean_t = jnp.sum(psumt, axis=0) * inv_cnt
    # NOTE: relations with zero edges get bias-only rows here; no edge ever
    # gathers them, so the output is unaffected (matches the torch module).
    mh = jnp.dot(mean_h, w_tc1, precision=_HP) + b_tc1
    mtl = jnp.dot(mean_t, w_tc1, precision=_HP) + b_tc1
    means2 = jnp.concatenate([mh, mtl], axis=1)                    # [R, 2*Dt]
    xr2 = jnp.dot(means2, w_sr1, precision=_HP) + b_sr1            # [R, Dr]
    logit = jnp.dot(xr2, a1, precision=_HP)                        # [R, 1]
    ymax = jnp.max(pymax, axis=0)
    # leaky_relu is monotone => segment_max(leaky(logit + y)) == leaky(logit + max y)
    e1m = logit + ymax
    gmax = jnp.where(e1m > 0.0, e1m, 0.01 * e1m)
    relstats = jnp.concatenate([logit, gmax], axis=1)              # [R, 2]

    # -------------------- pass 2: segment-softmax numerators ----------------
    req2 = (R * 2 * 4 + 2 * 5 * block_e * 4 + 2 * R * R * 4 + 4 * R * block_e * 4)
    cost2 = pl.CostEstimate(
        flops=int(2 * E_pad * R * (R + 2) + 8 * E_pad),
        transcendentals=int(E_pad),
        bytes_accessed=int(4 * (5 * E_pad + 2 * R + C * R * R)))
    ptnum = pl.pallas_call(
        _attn_scatter_kernel,
        out_shape=jax.ShapeDtypeStruct((C, R, R), jnp.float32),
        grid=(C, H),
        in_specs=[edge_idx_spec, edge_y_spec, _const_spec((R, 2))],
        out_specs=pl.BlockSpec((None, R, R), lambda c, j: (c, 0, 0)),
        compiler_params=pltpu.CompilerParams(
            dimension_semantics=("parallel", "arbitrary"),
            vmem_limit_bytes=_vmem_limit_bytes(req2)),
        cost_estimate=cost2,
    )(idx_packed, y_row, relstats)

    tnum = jnp.sum(ptnum, axis=0)                                  # [R, R]
    gsum = jnp.sum(tnum, axis=1, keepdims=True)                    # [R, 1]
    denom = jnp.where(gsum > 0.0, gsum, 1.0)
    x_type = jnp.dot(tnum / denom, xr2, precision=_HP)             # [R, Dr]

    # -------------------- pass 3: per-edge output (parallel) ----------------
    # Single gather table = [x_type | r_in(per relation)] padded to Dpad lanes.
    table = jnp.concatenate([x_type, means2], axis=1)              # [R, Dout]
    table_pad = jnp.pad(table, ((0, 0), (0, Dpad - Dout)))

    req3 = (R * Dpad * 4 + 2 * (4 + Dr) * block_e * 4
            + 2 * block_e * Dpad * 4 + R * block_e * 4 + 2 * block_e * Dpad * 4)
    cost3 = pl.CostEstimate(
        flops=int(2 * E_pad * R * Dpad + E_pad * Dpad),
        transcendentals=0,
        bytes_accessed=int(4 * (E_pad * (4 + Dr + Dpad) + R * Dpad)))
    out_pad = pl.pallas_call(
        _edge_output_kernel,
        out_shape=jax.ShapeDtypeStruct((E_pad, Dpad), jnp.float32),
        grid=(C * H,),
        in_specs=[pl.BlockSpec((4, block_e), lambda i: (0, i)),
                  pl.BlockSpec((block_e, Dr), lambda i: (i, 0)),
                  _const_spec((R, Dpad))],
        out_specs=pl.BlockSpec((block_e, Dpad), lambda i: (i, 0)),
        compiler_params=pltpu.CompilerParams(
            dimension_semantics=("parallel",),
            vmem_limit_bytes=_vmem_limit_bytes(req3)),
        cost_estimate=cost3,
    )(idx_packed, xres1_p, table_pad)

    return out_pad[:E, :Dout]


# ---------------------------------------------------------------------------
# Pure-JAX reference with the same semantics (segment ops).
# ---------------------------------------------------------------------------
def reference_forward(x_e, edge_h, edge_t, rel, rel_size, x_res1, p, num_rel):
    E = edge_h.shape[0]
    h = jnp.dot(x_e, p["W_tc1"], precision=_HP) + p["b_tc1"]
    h_h, h_t = h[edge_h], h[edge_t]
    cnt = jax.ops.segment_sum(jnp.ones((E,), jnp.float32), rel, num_segments=num_rel)
    cnt = jnp.where(cnt > 0, cnt, 1.0)
    mean_h = jax.ops.segment_sum(h_h, rel, num_segments=num_rel) / cnt[:, None]
    mean_t = jax.ops.segment_sum(h_t, rel, num_segments=num_rel) / cnt[:, None]
    r_in = jnp.concatenate([mean_h[rel], mean_t[rel]], axis=1)
    x_res2 = jnp.dot(r_in, p["W_sr1"], precision=_HP) + p["b_sr1"]
    e1 = (jnp.dot(x_res2, p["a1"], precision=_HP)
          + jnp.dot(x_res1, p["a5"], precision=_HP))[:, 0]
    leaky = jnp.where(e1 > 0, e1, 0.01 * e1)
    gmax = jax.ops.segment_max(leaky, rel, num_segments=num_rel)
    ex = jnp.exp(leaky - gmax[rel])
    gsum = jax.ops.segment_sum(ex, rel, num_segments=num_rel)
    alpha = ex / gsum[rel]
    xg = x_res2[rel_size]
    x_type = jax.ops.segment_sum(alpha[:, None] * xg, rel, num_segments=num_rel)
    x_res1_new = x_res1 + x_type[rel]
    return jnp.concatenate([x_res1_new, r_in], axis=1)


if __name__ == "__main__":
    # Small shapes consistent with the module's forward.
    N = 16          # number of entities
    E = 8           # number of edges
    e_hidden = 16
    t_hidden = 32
    r_hidden = 32

    key = jax.random.PRNGKey(0)
    ks = jax.random.split(key, 9)

    x_e = jax.random.normal(ks[0], (N, e_hidden), jnp.float32)
    edge_h = jax.random.randint(ks[1], (E,), 0, N, jnp.int32)
    edge_t = jax.random.randint(ks[2], (E,), 0, N, jnp.int32)
    rel = jnp.array([0, 0, 1, 1, 1, 2, 2, 0], jnp.int32)           # relation per edge
    num_rel = 3                                                    # rel.max() + 1
    rel_size = jax.random.permutation(ks[8], E).astype(jnp.int32)  # spmm column index
    x_res1 = jax.random.normal(ks[3], (E, r_hidden), jnp.float32)

    # Deterministic synthetic parameters (only those the forward touches):
    # t_c1 : Linear(e_hidden, t_hidden)   s_r1 : Linear(2*t_hidden, r_hidden)
    # a_1, a_5 : Linear(r_hidden, 1, bias=False)
    params = {
        "W_tc1": 0.1 * jax.random.normal(ks[4], (e_hidden, t_hidden), jnp.float32),
        "b_tc1": 0.05 * jnp.ones((t_hidden,), jnp.float32),
        "W_sr1": 0.1 * jax.random.normal(ks[5], (2 * t_hidden, r_hidden), jnp.float32),
        "b_sr1": 0.05 * jnp.ones((r_hidden,), jnp.float32),
        "a1": 0.1 * jax.random.normal(ks[6], (r_hidden, 1), jnp.float32),
        "a5": 0.1 * jax.random.normal(ks[7], (r_hidden, 1), jnp.float32),
    }
    # TODO(synk): the module's remaining Linears (t_r, s_r, a_2..a_4, a_6..a_12,
    # res, w_h, w_t, w_r, w_r1) are never used in forward(), so they are
    # intentionally omitted.

    out = gatt_to_r_forward(x_e, edge_h, edge_t, rel, rel_size, x_res1,
                            params, num_rel)
    out = jax.block_until_ready(out)

    ref = reference_forward(x_e, edge_h, edge_t, rel, rel_size, x_res1,
                            params, num_rel)
    assert out.shape == (E, r_hidden + 2 * t_hidden)
    err = float(jnp.max(jnp.abs(out - ref)))
    # Tolerance covers default (non-HIGHEST) MXU precision inside the kernels.
    assert jnp.allclose(out, ref, atol=1e-2, rtol=1e-2), (
        "mismatch vs reference: max abs err = %g" % err)

    print("KERNEL_OK")
</pallas_src>

<mosaic_0001>
module attributes {stable_mosaic.version = 11 : i64} {
  func.func @_probe_kernel(%arg0: i32, %arg1: memref<8x128xf32, #tpu.memory_space<vmem>>, %arg2: memref<8x128xf32, #tpu.memory_space<vmem>>) attributes {dimension_semantics = [#tpu.dimension_semantics<arbitrary>], iteration_bounds = array<i64: 2>, scalar_prefetch = 0 : i64, scratch_operands = 0 : i64, tpu.core_type = #tpu.core_type<tc>, window_params = [{pipeline_mode = #tpu.pipeline_mode<synchronous>, transform_indices = @transform_0, window_bounds = array<i64: 8, 128>}, {pipeline_mode = #tpu.pipeline_mode<synchronous>, transform_indices = @transform_1, window_bounds = array<i64: 8, 128>}]} {
    %c0 = arith.constant 0 : index
    %c0_0 = arith.constant 0 : index
    %0 = vector.load %arg1[%c0, %c0_0] : memref<8x128xf32, #tpu.memory_space<vmem>>, vector<8x128xf32>
    %cst = arith.constant 1.000000e+00 : f32
    %1 = vector.broadcast %cst : f32 to vector<8x128xf32>
    %2 = arith.addf %0, %1 : vector<8x128xf32>
    %c0_1 = arith.constant 0 : index
    %c0_2 = arith.constant 0 : index
    %3 = vector.load %arg2[%c0_1, %c0_2] : memref<8x128xf32, #tpu.memory_space<vmem>>, vector<8x128xf32>
    tpu.vector_store %arg2[%c0_1, %c0_2], %2 {strides = array<i32>} : memref<8x128xf32, #tpu.memory_space<vmem>>, vector<8x128xf32>,
    return
  }
  func.func @transform_0(%arg0: i32) -> (i32, i32) {
    %c0_i32 = arith.constant 0 : i32
    %c0_i32_0 = arith.constant 0 : i32
    %c0_i32_1 = arith.constant 0 : i32
    return %c0_i32, %c0_i32_0 : i32, i32
  }
  func.func @transform_1(%arg0: i32) -> (i32, i32) {
    %c0_i32 = arith.constant 0 : i32
    %c0_i32_0 = arith.constant 0 : i32
    %c0_i32_1 = arith.constant 0 : i32
    return %c0_i32, %c0_i32_0 : i32, i32
  }
}

module attributes {stable_mosaic.version = 11 : i64} {
  func.func @_relation_stats_kernel(%arg0: i32, %arg1: i32, %arg2: memref<4x128xi32, #tpu.memory_space<vmem>>, %arg3: memref<1x128xf32, #tpu.memory_space<vmem>>, %arg4: memref<16x16xf32, #tpu.memory_space<vmem>>, %arg5: memref<1x3x16xf32, #tpu.memory_space<vmem>>, %arg6: memref<1x3x16xf32, #tpu.memory_space<vmem>>, %arg7: memref<1x3x1xf32, #tpu.memory_space<vmem>>, %arg8: memref<1x3x1xf32, #tpu.memory_space<vmem>>) attributes {dimension_semantics = [#tpu.dimension_semantics<parallel>, #tpu.dimension_semantics<arbitrary>], iteration_bounds = array<i64: 2, 1>, scalar_prefetch = 0 : i64, scratch_operands = 0 : i64, tpu.core_type = #tpu.core_type<tc>, window_params = [{transform_indices = @transform_0, window_bounds = array<i64: 4, 128>}, {transform_indices = @transform_1, window_bounds = array<i64: 1, 128>}, {pipeline_mode = #tpu.pipeline_mode<synchronous>, transform_indices = @transform_2, window_bounds = array<i64: 16, 16>}, {transform_indices = @transform_3, window_bounds = array<i64: 1, 3, 16>}, {transform_indices = @transform_4, window_bounds = array<i64: 1, 3, 16>}, {transform_indices = @transform_5, window_bounds = array<i64: 1, 3, 1>}, {transform_indices = @transform_6, window_bounds = array<i64: 1, 3, 1>}]} {
    %c0_i32 = arith.constant 0 : i32
    %0 = arith.cmpi eq, %arg1, %c0_i32 : i32
    %1 = arith.extui %0 : i1 to i32
    %c0_i32_0 = arith.constant 0 : i32
    %2 = arith.cmpi ne, %1, %c0_i32_0 : i32
    scf.if %2 {
      %cst_38 = arith.constant 0.000000e+00 : f32
      %65 = vector.broadcast %cst_38 : f32 to vector<3x16xf32>
      %c0_39 = arith.constant 0 : index
      %c0_40 = arith.constant 0 : index
      %c0_41 = arith.constant 0 : index
      %66 = vector.load %arg5[%c0_39, %c0_40, %c0_41] : memref<1x3x16xf32, #tpu.memory_space<vmem>>, vector<1x3x16xf32>
      %67 = vector.shape_cast %66 : vector<1x3x16xf32> to vector<3x16xf32>
      %68 = vector.shape_cast %65 : vector<3x16xf32> to vector<1x3x16xf32>
      tpu.vector_store %arg5[%c0_39, %c0_40, %c0_41], %68 {strides = array<i32>} : memref<1x3x16xf32, #tpu.memory_space<vmem>>, vector<1x3x16xf32>,
      %cst_42 = arith.constant 0.000000e+00 : f32
      %69 = vector.broadcast %cst_42 : f32 to vector<3x16xf32>
      %c0_43 = arith.constant 0 : index
      %c0_44 = arith.constant 0 : index
      %c0_45 = arith.constant 0 : index
      %70 = vector.load %arg6[%c0_43, %c0_44, %c0_45] : memref<1x3x16xf32, #tpu.memory_space<vmem>>, vector<1x3x16xf32>
      %71 = vector.shape_cast %70 : vector<1x3x16xf32> to vector<3x16xf32>
      %72 = vector.shape_cast %69 : vector<3x16xf32> to vector<1x3x16xf32>
      tpu.vector_store %arg6[%c0_43, %c0_44, %c0_45], %72 {strides = array<i32>} : memref<1x3x16xf32, #tpu.memory_space<vmem>>, vector<1x3x16xf32>,
      %cst_46 = arith.constant 0.000000e+00 : f32
      %73 = vector.broadcast %cst_46 : f32 to vector<3x1xf32>
      %c0_47 = arith.constant 0 : index
      %c0_48 = arith.constant 0 : index
      %c0_49 = arith.constant 0 : index
      %74 = vector.load %arg7[%c0_47, %c0_48, %c0_49] : memref<1x3x1xf32, #tpu.memory_space<vmem>>, vector<1x3x1xf32>
      %75 = vector.shape_cast %74 : vector<1x3x1xf32> to vector<3x1xf32>
      %76 = vector.shape_cast %73 : vector<3x1xf32> to vector<1x3x1xf32>
      tpu.vector_store %arg7[%c0_47, %c0_48, %c0_49], %76 {strides = array<i32>} : memref<1x3x1xf32, #tpu.memory_space<vmem>>, vector<1x3x1xf32>,
      %cst_50 = arith.constant -1.000000e+30 : f32
      %77 = vector.broadcast %cst_50 : f32 to vector<3x1xf32>
      %c0_51 = arith.constant 0 : index
      %c0_52 = arith.constant 0 : index
      %c0_53 = arith.constant 0 : index
      %78 = vector.load %arg8[%c0_51, %c0_52, %c0_53] : memref<1x3x1xf32, #tpu.memory_space<vmem>>, vector<1x3x1xf32>
      %79 = vector.shape_cast %78 : vector<1x3x1xf32> to vector<3x1xf32>
      %80 = vector.shape_cast %77 : vector<3x1xf32> to vector<1x3x1xf32>
      tpu.vector_store %arg8[%c0_51, %c0_52, %c0_53], %80 {strides = array<i32>} : memref<1x3x1xf32, #tpu.memory_space<vmem>>, vector<1x3x1xf32>,
    } else {
    }
    %c0 = arith.constant 0 : index
    %c0_1 = arith.constant 0 : index
    %3 = vector.load %arg2[%c0, %c0_1] : memref<4x128xi32, #tpu.memory_space<vmem>>, vector<1x128xi32>
    %c1 = arith.constant 1 : index
    %c0_2 = arith.constant 0 : index
    %4 = vector.load %arg2[%c1, %c0_2] : memref<4x128xi32, #tpu.memory_space<vmem>>, vector<1x128xi32>
    %c2 = arith.constant 2 : index
    %c0_3 = arith.constant 0 : index
    %5 = vector.load %arg2[%c2, %c0_3] : memref<4x128xi32, #tpu.memory_space<vmem>>, vector<1x128xi32>
    %6 = tpu.iota {dimensions = array<i32: 0>} : vector<3x128xi32>
    %7 = vector.broadcast %5 : vector<1x128xi32> to vector<3x128xi32>
    %8 = arith.cmpi eq, %6, %7 : vector<3x128xi32>
    %9 = arith.extui %8 : vector<3x128xi1> to vector<3x128xi32>
    %10 = arith.sitofp %9 : vector<3x128xi32> to vector<3x128xf32>
    %11 = arith.truncf %10 : vector<3x128xf32> to vector<3x128xbf16>
    %12 = tpu.iota {dimensions = array<i32: 0>} : vector<33x128xi32>
    %13 = vector.broadcast %3 : vector<1x128xi32> to vector<33x128xi32>
    %14 = arith.cmpi eq, %12, %13 : vector<33x128xi32>
    %c16_i32 = arith.constant 16 : i32
    %15 = vector.broadcast %c16_i32 : i32 to vector<1x128xi32>
    %16 = arith.addi %4, %15 : vector<1x128xi32>
    %17 = vector.broadcast %16 : vector<1x128xi32> to vector<33x128xi32>
    %18 = arith.cmpi eq, %12, %17 : vector<33x128xi32>
    %19 = arith.ori %14, %18 : vector<33x128xi1>
    %c32_i32 = arith.constant 32 : i32
    %20 = vector.broadcast %c32_i32 : i32 to vector<33x128xi32>
    %21 = arith.cmpi eq, %12, %20 : vector<33x128xi32>
    %22 = arith.ori %19, %21 : vector<33x128xi1>
    %23 = arith.extui %22 : vector<33x128xi1> to vector<33x128xi32>
    %24 = arith.sitofp %23 : vector<33x128xi32> to vector<33x128xf32>
    %25 = arith.truncf %24 : vector<33x128xf32> to vector<33x128xbf16>
    %cst = arith.constant dense<0.000000e+00> : vector<3x33xf32>
    %26 = tpu.matmul %11, %25, %cst {dimension_numbers = #tpu.dot_dimension_numbers<[1], [1], [0], [0], [0, 0, 1, 0], [], []>} : vector<3x128xbf16>, vector<33x128xbf16>, vector<3x33xf32> -> vector<3x33xf32>
    %c0_4 = arith.constant 0 : index
    %c0_5 = arith.constant 0 : index
    %c0_6 = arith.constant 0 : index
    %27 = vector.load %arg5[%c0_4, %c0_5, %c0_6] : memref<1x3x16xf32, #tpu.memory_space<vmem>>, vector<1x3x16xf32>
    %28 = vector.shape_cast %27 : vector<1x3x16xf32> to vector<3x16xf32>
    %29 = vector.extract_strided_slice %26 {offsets = [0, 0], sizes = [3, 16], strides = [1, 1]} : vector<3x33xf32> to vector<3x16xf32>
    %c0_7 = arith.constant 0 : index
    %c0_8 = arith.constant 0 : index
    %30 = vector.load %arg4[%c0_7, %c0_8] : memref<16x16xf32, #tpu.memory_space<vmem>>, vector<16x16xf32>
    %cst_9 = arith.constant dense<0.000000e+00> : vector<3x16xf32>
    %31 = tpu.matmul %29, %30, %cst_9 {dimension_numbers = #tpu.dot_dimension_numbers<[1], [0], [0], [1], [0, 0, 1, 1], [], []>} : vector<3x16xf32>, vector<16x16xf32>, vector<3x16xf32> -> vector<3x16xf32>
    %32 = arith.addf %28, %31 : vector<3x16xf32>
    %c0_10 = arith.constant 0 : index
    %c0_11 = arith.constant 0 : index
    %c0_12 = arith.constant 0 : index
    %33 = vector.load %arg5[%c0_10, %c0_11, %c0_12] : memref<1x3x16xf32, #tpu.memory_space<vmem>>, vector<1x3x16xf32>
    %34 = vector.shape_cast %33 : vector<1x3x16xf32> to vector<3x16xf32>
    %35 = vector.shape_cast %32 : vector<3x16xf32> to vector<1x3x16xf32>
    tpu.vector_store %arg5[%c0_10, %c0_11, %c0_12], %35 {strides = array<i32>} : memref<1x3x16xf32, #tpu.memory_space<vmem>>, vector<1x3x16xf32>,
    %c0_13 = arith.constant 0 : index
    %c0_14 = arith.constant 0 : index
    %c0_15 = arith.constant 0 : index
    %36 = vector.load %arg6[%c0_13, %c0_14, %c0_15] : memref<1x3x16xf32, #tpu.memory_space<vmem>>, vector<1x3x16xf32>
    %37 = vector.shape_cast %36 : vector<1x3x16xf32> to vector<3x16xf32>
    %38 = vector.extract_strided_slice %26 {offsets = [0, 16], sizes = [3, 16], strides = [1, 1]} : vector<3x33xf32> to vector<3x16xf32>
    %c0_16 = arith.constant 0 : index
    %c0_17 = arith.constant 0 : index
    %39 = vector.load %arg4[%c0_16, %c0_17] : memref<16x16xf32, #tpu.memory_space<vmem>>, vector<16x16xf32>
    %cst_18 = arith.constant dense<0.000000e+00> : vector<3x16xf32>
    %40 = tpu.matmul %38, %39, %cst_18 {dimension_numbers = #tpu.dot_dimension_numbers<[1], [0], [0], [1], [0, 0, 1, 1], [], []>} : vector<3x16xf32>, vector<16x16xf32>, vector<3x16xf32> -> vector<3x16xf32>
    %41 = arith.addf %37, %40 : vector<3x16xf32>
    %c0_19 = arith.constant 0 : index
    %c0_20 = arith.constant 0 : index
    %c0_21 = arith.constant 0 : index
    %42 = vector.load %arg6[%c0_19, %c0_20, %c0_21] : memref<1x3x16xf32, #tpu.memory_space<vmem>>, vector<1x3x16xf32>
    %43 = vector.shape_cast %42 : vector<1x3x16xf32> to vector<3x16xf32>
    %44 = vector.shape_cast %41 : vector<3x16xf32> to vector<1x3x16xf32>
    tpu.vector_store %arg6[%c0_19, %c0_20, %c0_21], %44 {strides = array<i32>} : memref<1x3x16xf32, #tpu.memory_space<vmem>>, vector<1x3x16xf32>,
    %c0_22 = arith.constant 0 : index
    %c0_23 = arith.constant 0 : index
    %c0_24 = arith.constant 0 : index
    %45 = vector.load %arg7[%c0_22, %c0_23, %c0_24] : memref<1x3x1xf32, #tpu.memory_space<vmem>>, vector<1x3x1xf32>
    %46 = vector.shape_cast %45 : vector<1x3x1xf32> to vector<3x1xf32>
    %47 = vector.extract_strided_slice %26 {offsets = [0, 32], sizes = [3, 1], strides = [1, 1]} : vector<3x33xf32> to vector<3x1xf32>
    %48 = arith.addf %46, %47 : vector<3x1xf32>
    %c0_25 = arith.constant 0 : index
    %c0_26 = arith.constant 0 : index
    %c0_27 = arith.constant 0 : index
    %49 = vector.load %arg7[%c0_25, %c0_26, %c0_27] : memref<1x3x1xf32, #tpu.memory_space<vmem>>, vector<1x3x1xf32>
    %50 = vector.shape_cast %49 : vector<1x3x1xf32> to vector<3x1xf32>
    %51 = vector.shape_cast %48 : vector<3x1xf32> to vector<1x3x1xf32>
    tpu.vector_store %arg7[%c0_25, %c0_26, %c0_27], %51 {strides = array<i32>} : memref<1x3x1xf32, #tpu.memory_space<vmem>>, vector<1x3x1xf32>,
    %c0_28 = arith.constant 0 : index
    %c0_29 = arith.constant 0 : index
    %52 = vector.load %arg3[%c0_28, %c0_29] : memref<1x128xf32, #tpu.memory_space<vmem>>, vector<1x128xf32>
    %cst_30 = arith.constant -1.000000e+30 : f32
    %53 = vector.shape_cast %52 : vector<1x128xf32> to vector<1x128xf32>
    %54 = vector.broadcast %53 : vector<1x128xf32> to vector<3x128xf32>
    %55 = vector.broadcast %cst_30 : f32 to vector<3x128xf32>
    %56 = arith.select %8, %54, %55 : vector<3x128xi1>, vector<3x128xf32>
    %c0_31 = arith.constant 0 : index
    %c0_32 = arith.constant 0 : index
    %c0_33 = arith.constant 0 : index
    %57 = vector.load %arg8[%c0_31, %c0_32, %c0_33] : memref<1x3x1xf32, #tpu.memory_space<vmem>>, vector<1x3x1xf32>
    %58 = vector.shape_cast %57 : vector<1x3x1xf32> to vector<3x1xf32>
    %cst_34 = arith.constant dense<0xFF800000> : vector<3xf32>
    %59 = vector.multi_reduction <maximumf>, %56, %cst_34 [1] : vector<3x128xf32> to vector<3xf32>
    %60 = vector.shape_cast %59 : vector<3xf32> to vector<3x1xf32>
    %61 = arith.maximumf %58, %60 : vector<3x1xf32>
    %c0_35 = arith.constant 0 : index
    %c0_36 = arith.constant 0 : index
    %c0_37 = arith.constant 0 : index
    %62 = vector.load %arg8[%c0_35, %c0_36, %c0_37] : memref<1x3x1xf32, #tpu.memory_space<vmem>>, vector<1x3x1xf32>
    %63 = vector.shape_cast %62 : vector<1x3x1xf32> to vector<3x1xf32>
    %64 = vector.shape_cast %61 : vector<3x1xf32> to vector<1x3x1xf32>
    tpu.vector_store %arg8[%c0_35, %c0_36, %c0_37], %64 {strides = array<i32>} : memref<1x3x1xf32, #tpu.memory_space<vmem>>, vector<1x3x1xf32>,
    return
  }
  func.func @transform_0(%arg0: i32, %arg1: i32) -> (i32, i32) {
    %c1_i32 = arith.constant 1 : i32
    %0 = arith.muli %arg0, %c1_i32 : i32
    %1 = arith.addi %0, %arg1 : i32
    %c0_i32 = arith.constant 0 : i32
    %c0_i32_0 = arith.constant 0 : i32
    return %c0_i32, %1 : i32, i32
  }
  func.func @transform_1(%arg0: i32, %arg1: i32) -> (i32, i32) {
    %c1_i32 = arith.constant 1 : i32
    %0 = arith.muli %arg0, %c1_i32 : i32
    %1 = arith.addi %0, %arg1 : i32
    %c0_i32 = arith.constant 0 : i32
    %c0_i32_0 = arith.constant 0 : i32
    return %c0_i32, %1 : i32, i32
  }
  func.func @transform_2(%arg0: i32, %arg1: i32) -> (i32, i32) {
    %c0_i32 = arith.constant 0 : i32
    %c0_i32_0 = arith.constant 0 : i32
    %c0_i32_1 = arith.constant 0 : i32
    return %c0_i32, %c0_i32_0 : i32, i32
  }
  func.func @transform_3(%arg0: i32, %arg1: i32) -> (i32, i32, i32) {
    %c0_i32 = arith.constant 0 : i32
    %c0_i32_0 = arith.constant 0 : i32
    %c0_i32_1 = arith.constant 0 : i32
    return %arg0, %c0_i32, %c0_i32_0 : i32, i32, i32
  }
  func.func @transform_4(%arg0: i32, %arg1: i32) -> (i32, i32, i32) {
    %c0_i32 = arith.constant 0 : i32
    %c0_i32_0 = arith.constant 0 : i32
    %c0_i32_1 = arith.constant 0 : i32
    return %arg0, %c0_i32, %c0_i32_0 : i32, i32, i32
  }
  func.func @transform_5(%arg0: i32, %arg1: i32) -> (i32, i32, i32) {
    %c0_i32 = arith.constant 0 : i32
    %c0_i32_0 = arith.constant 0 : i32
    %c0_i32_1 = arith.constant 0 : i32
    return %arg0, %c0_i32, %c0_i32_0 : i32, i32, i32
  }
  func.func @transform_6(%arg0: i32, %arg1: i32) -> (i32, i32, i32) {
    %c0_i32 = arith.constant 0 : i32
    %c0_i32_0 = arith.constant 0 : i32
    %c0_i32_1 = arith.constant 0 : i32
    return %arg0, %c0_i32, %c0_i32_0 : i32, i32, i32
  }
}

</mosaic_0001>

<llo_original>
// kernel: tpu_custom_call.1
$region0: #{tpu_custom_call.1}
  #allocation0 [shape = 'u32[]', space=smem, size = 0x4, offset = 0x4, fixed_abs, tag = 'smem constant byte address 0x4 - core index']
  #allocation1 [shape = 'u32[144,128]{1,0:T(1,128)}', space=vmem, size = 0x12000, scoped, tag = 'internal scratch']
  %s0 = inlined_call_operand.hbm [shape: f32[8,128], index: 0, kind: input, shape index: {}]
  %s1 = inlined_call_operand.hbm [shape: f32[8,128], index: 1, kind: output, shape index: {}]
  %s2 = sld [smem:[#allocation0]]
  $region41: #{tpu_custom_call.1} parent=0
    _
  %s4 = ssub.s32 1, %s2
  %s5 = scalar_select 0, %s4, %s2
  $region1: #{tpu_custom_call.1} parent=0
    #allocation2 [shape = 'u8[4096]{0}', space=vmem, size = 0x1000, scoped, tag = 'input window, operand 0, single buffered']
    #allocation3 [shape = 's32[2]{0}', space=sflag, size = 0x8, scoped, tag = 'scoped memory for tpu_custom_call.1']
    #allocation4 [shape = 's32[2]{0}', space=sflag, size = 0x8, scoped, tag = 'scoped memory for tpu_custom_call.1']
    #allocation5 [shape = 'u8[4096]{0}', space=vmem, size = 0x1000, scoped, tag = 'output window, operand 0, single buffered']
    %6 = vsyncpa [#allocation3], 0
    %7 = vsyncpa [#allocation4], 0
    loop: start=0, step=1, limit=4
    $region2: #{tpu_custom_call.1} parent=1 // loop_pre_header
      _
    $region3: #{tpu_custom_call.1} parent=1 // loop_header
      %s9 = sphi 0, %s13
      %p10 = scmp.ge.s32.totalorder %s9, 4
      %s17 = sphi 0, %s17
      %s19 = sphi 0, %s17
      %s20 = sphi 0, %s19
      %s34 = sphi 0, %s20
      %s38 = sphi 0, %s38
      %s40 = sphi 0, %s38
      %s41 = sphi 0, %s40
      %s55 = sphi 0, %s41
    $region4: #{tpu_custom_call.1} parent=1 // loop_header_branch
      %12 = sbr.rel (%p10) target = $region8
    $region5: #{tpu_custom_call.1} parent=1 // loop_body
      %s14 = ssub.s32 %s9, 1
      %s15 = ssub.s32 %s9, 2
      %s16 = sadd.s32 %s9, 1
      %s18 = sadd.s32 %s17, 1
      %p21 = scmp.eq.s32.totalorder %s9, 1
      %p22 = scmp.ne.s32.totalorder %s17, %s19
      %p23 = scmp.eq.s32.totalorder %s9, 0
      %p24 = por %p22, %p23
      %p25 = scmp.ne.s32.totalorder %s17, %s19
      %p26 = scmp.eq.s32.totalorder %s14, 1
      %p27 = por %p25, %p26
      %p28 = scmp.ne.s32.totalorder %s19, %s20
      %p29 = scmp.eq.s32.totalorder %s14, 0
      %p30 = por %p28, %p29
      %p31 = scmp.ne.s32.totalorder %s19, %s20
      %p32 = scmp.eq.s32.totalorder %s15, 1
      %p33 = por %p31, %p32
      %p35 = scmp.ne.s32.totalorder %s20, %s34
      %p36 = scmp.eq.s32.totalorder %s15, 0
      %p37 = por %p35, %p36
      %s39 = sadd.s32 %s38, 1
      %p42 = scmp.eq.s32.totalorder %s9, 1
      %p43 = scmp.ne.s32.totalorder %s38, %s40
      %p44 = scmp.eq.s32.totalorder %s9, 0
      %p45 = por %p43, %p44
      %p46 = scmp.ne.s32.totalorder %s38, %s40
      %p47 = scmp.eq.s32.totalorder %s14, 1
      %p48 = por %p46, %p47
      %p49 = scmp.ne.s32.totalorder %s40, %s41
      %p50 = scmp.eq.s32.totalorder %s14, 0
      %p51 = por %p49, %p50
      %p52 = scmp.ne.s32.totalorder %s40, %s41
      %p53 = scmp.eq.s32.totalorder %s15, 1
      %p54 = por %p52, %p53
      %p56 = scmp.ne.s32.totalorder %s41, %s55
      %p57 = scmp.eq.s32.totalorder %s15, 0
      %p58 = por %p56, %p57
      %p59 = scmp.le.s32.totalorder 1, %s9
      %p60 = scmp.lt.s32.totalorder %s9, 3
      %p61 = pnand %p59, %p60
      %p62 = pneg %p61
      // Predicated region
      $region9: #{tpu_custom_call.1} parent=5 // pred_check
        _
      $region10: #{tpu_custom_call.1} parent=5 // pred_check_branch
        %64 = sbr.rel (%p61) target = $region12
      $region11: #{tpu_custom_call.1} parent=5 // pred_region
        %s65 = ssub.s32 %s9, 1
        // Predicated region
        $region13: #{tpu_custom_call.1} parent=11 // pred_check
          %p66 = pneg %p30
        $region14: #{tpu_custom_call.1} parent=11 // pred_check_branch
          %68 = sbr.rel (%p66) target = $region16
        $region15: #{tpu_custom_call.1} parent=11 // pred_region
          %s70 = ssub.s32 128, 128
          %71 = vsyncadd [#allocation3], %s70
          %s73 = sshll.u32 [#allocation2], 4
          %s74 = int_to_ptr.vmem [resolvable:$true] %s73
          %76 = dma.hbm_to_vmem [thread:$0]  %s0, 128, %s74, [#allocation3]
        $region16: #{tpu_custom_call.1} parent=11 // pred_fallthru
          _
      $region12: #{tpu_custom_call.1} parent=5 // pred_fallthru
        _
      %p77 = scmp.lt.s32.totalorder %s9, 2
      // Predicated region
      $region17: #{tpu_custom_call.1} parent=5 // pred_check
        %p78 = pneg %p77
      $region18: #{tpu_custom_call.1} parent=5 // pred_check_branch
        %80 = sbr.rel (%p78) target = $region20
      $region19: #{tpu_custom_call.1} parent=5 // pred_region
        _
      $region20: #{tpu_custom_call.1} parent=5 // pred_fallthru
        _
      %p81 = scmp.le.s32.totalorder 1, %s9
      %p82 = scmp.lt.s32.totalorder %s9, 3
      %p83 = pnand %p81, %p82
      %p84 = pneg %p83
      // Predicated region
      $region21: #{tpu_custom_call.1} parent=5 // pred_check
        _
      $region22: #{tpu_custom_call.1} parent=5 // pred_check_branch
        %86 = sbr.rel (%p83) target = $region24
      $region23: #{tpu_custom_call.1} parent=5 // pred_region
        %s87 = ssub.s32 %s9, 1
        // Predicated region
        $region25: #{tpu_custom_call.1} parent=23 // pred_check
          %p88 = pneg %p30
        $region26: #{tpu_custom_call.1} parent=23 // pred_check_branch
          %90 = sbr.rel (%p88) target = $region28
        $region27: #{tpu_custom_call.1} parent=23 // pred_region
          %91 = dma.done [#allocation3], 128
        $region28: #{tpu_custom_call.1} parent=23 // pred_fallthru
          _
        %p92 = pneg %p30
        %p93 = pneg %p27
        %p94 = pneg %p51
        %p95 = pneg %p48
        %v96 = vld [vmem:[#allocation2] sm:$0xff]
        %v97 = vadd.f32 %v96, 1.0
        %98 = vst [vmem:[#allocation5] sm:$0xff] %v97
        // Predicated region
        $region29: #{tpu_custom_call.1} parent=23 // pred_check
          %p99 = pneg %p48
        $region30: #{tpu_custom_call.1} parent=23 // pred_check_branch
          %101 = sbr.rel (%p99) target = $region32
        $region31: #{tpu_custom_call.1} parent=23 // pred_region
          %s103 = ssub.s32 128, 128
          %104 = vsyncadd [#allocation4], %s103
          %s106 = sshll.u32 [#allocation5], 4
          %s107 = int_to_ptr.vmem [resolvable:$true] %s106
          %109 = dma.vmem_to_hbm [thread:$0]  %s107, 128, %s1, [#allocation4]
        $region32: #{tpu_custom_call.1} parent=23 // pred_fallthru
          _
        // Predicated region
        $region33: #{tpu_custom_call.1} parent=23 // pred_check
          %p110 = pneg %p48
        $region34: #{tpu_custom_call.1} parent=23 // pred_check_branch
          %112 = sbr.rel (%p110) target = $region36
        $region35: #{tpu_custom_call.1} parent=23 // pred_region
          %113 = dma.done [#allocation4], 128
        $region36: #{tpu_custom_call.1} parent=23 // pred_fallthru
          _
      $region24: #{tpu_custom_call.1} parent=5 // pred_fallthru
        _
      %p114 = scmp.le.s32.totalorder 2, %s9
      // Predicated region
      $region37: #{tpu_custom_call.1} parent=5 // pred_check
        %p115 = pneg %p114
      $region38: #{tpu_custom_call.1} parent=5 // pred_check_branch
        %117 = sbr.rel (%p115) target = $region40
      $region39: #{tpu_custom_call.1} parent=5 // pred_region
        %s118 = ssub.s32 %s9, 2
      $region40: #{tpu_custom_call.1} parent=5 // pred_fallthru
        _
    $region6: #{tpu_custom_call.1} parent=1 // loop_footer
      %s13 = sadd.s32 1, %s9
    $region7: #{tpu_custom_call.1} parent=1 // loop_footer_branch
      %8 = sbr.rel target = $region3
    $region8: #{tpu_custom_call.1} parent=1 // loop_exit
      _
    %119 = vsyncpa [#allocation3], 1
    %s120 = scalar_lea.sflag [#allocation3], 1
    %121 = vsyncpa %s120, 1
    %122 = vsyncpa [#allocation4], 1
    %s123 = scalar_lea.sflag [#allocation4], 1
    %124 = vsyncpa %s123, 1

// kernel: tpu_custom_call.1
$region0: #{tpu_custom_call.1}
  #allocation0 [shape = 'u32[]', space=smem, size = 0x4, offset = 0x4, fixed_abs, tag = 'smem constant byte address 0x4 - core index']
  #allocation1 [shape = 'u32[144,128]{1,0:T(1,128)}', space=vmem, size = 0x12000, scoped, tag = 'internal scratch']
  %s0 = inlined_call_operand.hbm [shape: s32[4,256], index: 0, kind: input, shape index: {}]
  %s1 = inlined_call_operand.vmem [shape: f32[1,256], index: 1, kind: input, shape index: {}]
  %s2 = inlined_call_operand.hbm [shape: f32[16,16], index: 2, kind: input, shape index: {}]
  %s3 = inlined_call_operand.vmem [shape: f32[2,3,16], index: 3, kind: output, shape index: {0}]
  %s4 = inlined_call_operand.vmem [shape: f32[2,3,16], index: 4, kind: output, shape index: {1}]
  %s5 = inlined_call_operand.vmem [shape: f32[2,3,1], index: 5, kind: output, shape index: {2}]
  %s6 = inlined_call_operand.vmem [shape: f32[2,3,1], index: 6, kind: output, shape index: {3}]
  %7 = xla_tuple %s3, %s4, %s5, %s6
  %s8 = sld [smem:[#allocation0]]
  $region81: #{tpu_custom_call.1} parent=0
    _
  %s10 = ssub.s32 1, %s8
  %s11 = scalar_select 0, %s10, %s8
  $region1: #{tpu_custom_call.1} parent=0
    #allocation2 [shape = 'u8[4096]{0}', space=vmem, size = 0x1000, scoped, tag = 'input window, operand 0']
    #allocation3 [shape = 's32[2]{0}', space=sflag, size = 0x8, scoped, tag = 'scoped memory for tpu_custom_call.1']
    #allocation4 [shape = 'u8[8192]{0}', space=vmem, size = 0x2000, scoped, tag = 'input window, operand 2, single buffered']
    #allocation5 [shape = 's32[1]{0}', space=sflag, size = 0x4, scoped, tag = 'scoped memory for tpu_custom_call.1']
    %12 = vsyncpa [#allocation3], 0
    %s13 = scalar_lea.sflag [#allocation3], 1
    %14 = vsyncpa %s13, 0
    %15 = vsyncpa [#allocation5], 0
    loop: start=0, step=1, limit=4
    $region2: #{tpu_custom_call.1} parent=1 // loop_pre_header
      _
    $region3: #{tpu_custom_call.1} parent=1 // loop_header
      %s17 = sphi 0, %s21
      %p18 = scmp.ge.s32.totalorder %s17, 4
      %s24 = sphi 0, %s36
      %s25 = sphi 0, %s32
      %s26 = sphi 0, %s24
      %s27 = sphi 0, %s25
      %s28 = sphi 0, %s26
      %s29 = sphi 0, %s27
      %s41 = sphi 0, %s43
      %s44 = sphi 0, %s41
      %s45 = sphi 0, %s44
      %s61 = sphi 0, %s45
      %s69 = sphi 0, %s71
      %s72 = sphi 0, %s69
      %s73 = sphi 0, %s72
      %s89 = sphi 0, %s73
      %s93 = sphi 0, %s93
      %s95 = sphi 0, %s93
      %s96 = sphi 0, %s95
      %s110 = sphi 0, %s96
      %s116 = sphi 0, %s118
      %s119 = sphi 0, %s116
      %s120 = sphi 0, %s119
      %s136 = sphi 0, %s120
      %s142 = sphi 0, %s144
      %s145 = sphi 0, %s142
      %s146 = sphi 0, %s145
      %s162 = sphi 0, %s146
      %s168 = sphi 0, %s170
      %s171 = sphi 0, %s168
      %s172 = sphi 0, %s171
      %s188 = sphi 0, %s172
      %s194 = sphi 0, %s196
      %s197 = sphi 0, %s194
      %s198 = sphi 0, %s197
      %s214 = sphi 0, %s198
    $region4: #{tpu_custom_call.1} parent=1 // loop_header_branch
      %20 = sbr.rel (%p18) target = $region8
    $region5: #{tpu_custom_call.1} parent=1 // loop_body
      %s22 = ssub.s32 %s17, 1
      %s23 = ssub.s32 %s17, 2
      %s30 = sadd.s32 1, %s25
      %p31 = scmp.ge.s32.totalorder %s30, 1
      %s32 = scalar_select %p31, 0, %s30
      %s33 = sadd.s32 1, %s24
      %s34 = scalar_select %p31, %s33, %s24
      %p35 = scmp.ge.s32.totalorder %s34, 2
      %s36 = scalar_select %p35, 0, %s34
      %s37 = sadd.s32 %s24, %s25
      %s38 = sadd.s32 %s36, %s32
      %s39 = ssub.s32 %s37, %s38
      %p40 = scmp.eq.s32.totalorder %s39, 0
      %s42 = sadd.s32 %s41, 1
      %s43 = scalar_select %p40, %s41, %s42
      %p46 = pneg %p40
      %p47 = scmp.eq.s32.totalorder %s17, 1
      %p48 = por %p46, %p47
      %p49 = scmp.ne.s32.totalorder %s41, %s44
      %p50 = scmp.eq.s32.totalorder %s17, 0
      %p51 = por %p49, %p50
      %p52 = scmp.ne.s32.totalorder %s41, %s44
      %p53 = scmp.eq.s32.totalorder %s22, 1
      %p54 = por %p52, %p53
      %p55 = scmp.ne.s32.totalorder %s44, %s45
      %p56 = scmp.eq.s32.totalorder %s22, 0
      %p57 = por %p55, %p56
      %p58 = scmp.ne.s32.totalorder %s44, %s45
      %p59 = scmp.eq.s32.totalorder %s23, 1
      %p60 = por %p58, %p59
      %p62 = scmp.ne.s32.totalorder %s45, %s61
      %p63 = scmp.eq.s32.totalorder %s23, 0
      %p64 = por %p62, %p63
      %s65 = sadd.s32 %s24, %s25
      %s66 = sadd.s32 %s36, %s32
      %s67 = ssub.s32 %s65, %s66
      %p68 = scmp.eq.s32.totalorder %s67, 0
      %s70 = sadd.s32 %s69, 1
      %s71 = scalar_select %p68, %s69, %s70
      %p74 = pneg %p68
      %p75 = scmp.eq.s32.totalorder %s17, 1
      %p76 = por %p74, %p75
      %p77 = scmp.ne.s32.totalorder %s69, %s72
      %p78 = scmp.eq.s32.totalorder %s17, 0
      %p79 = por %p77, %p78
      %p80 = scmp.ne.s32.totalorder %s69, %s72
      %p81 = scmp.eq.s32.totalorder %s22, 1
      %p82 = por %p80, %p81
      %p83 = scmp.ne.s32.totalorder %s72, %s73
      %p84 = scmp.eq.s32.totalorder %s22, 0
      %p85 = por %p83, %p84
      %p86 = scmp.ne.s32.totalorder %s72, %s73
      %p87 = scmp.eq.s32.totalorder %s23, 1
      %p88 = por %p86, %p87
      %p90 = scmp.ne.s32.totalorder %s73, %s89
      %p91 = scmp.eq.s32.totalorder %s23, 0
      %p92 = por %p90, %p91
      %s94 = sadd.s32 %s93, 1
      %p97 = scmp.eq.s32.totalorder %s17, 1
      %p98 = scmp.ne.s32.totalorder %s93, %s95
      %p99 = scmp.eq.s32.totalorder %s17, 0
      %p100 = por %p98, %p99
      %p101 = scmp.ne.s32.totalorder %s93, %s95
      %p102 = scmp.eq.s32.totalorder %s22, 1
      %p103 = por %p101, %p102
      %p104 = scmp.ne.s32.totalorder %s95, %s96
      %p105 = scmp.eq.s32.totalorder %s22, 0
      %p106 = por %p104, %p105
      %p107 = scmp.ne.s32.totalorder %s95, %s96
      %p108 = scmp.eq.s32.totalorder %s23, 1
      %p109 = por %p107, %p108
      %p111 = scmp.ne.s32.totalorder %s96, %s110
      %p112 = scmp.eq.s32.totalorder %s23, 0
      %p113 = por %p111, %p112
      %s114 = ssub.s32 %s24, %s36
      %p115 = scmp.eq.s32.totalorder %s114, 0
      %s117 = sadd.s32 %s116, 1
      %s118 = scalar_select %p115, %s116, %s117
      %p121 = pneg %p115
      %p122 = scmp.eq.s32.totalorder %s17, 1
      %p123 = por %p121, %p122
      %p124 = scmp.ne.s32.totalorder %s116, %s119
      %p125 = scmp.eq.s32.totalorder %s17, 0
      %p126 = por %p124, %p125
      %p127 = scmp.ne.s32.totalorder %s116, %s119
      %p128 = scmp.eq.s32.totalorder %s22, 1
      %p129 = por %p127, %p128
      %p130 = scmp.ne.s32.totalorder %s119, %s120
      %p131 = scmp.eq.s32.totalorder %s22, 0
      %p132 = por %p130, %p131
      %p133 = scmp.ne.s32.totalorder %s119, %s120
      %p134 = scmp.eq.s32.totalorder %s23, 1
      %p135 = por %p133, %p134
      %p137 = scmp.ne.s32.totalorder %s120, %s136
      %p138 = scmp.eq.s32.totalorder %s23, 0
      %p139 = por %p137, %p138
      %s140 = ssub.s32 %s24, %s36
      %p141 = scmp.eq.s32.totalorder %s140, 0
      %s143 = sadd.s32 %s142, 1
      %s144 = scalar_select %p141, %s142, %s143
      %p147 = pneg %p141
      %p148 = scmp.eq.s32.totalorder %s17, 1
      %p149 = por %p147, %p148
      %p150 = scmp.ne.s32.totalorder %s142, %s145
      %p151 = scmp.eq.s32.totalorder %s17, 0
      %p152 = por %p150, %p151
      %p153 = scmp.ne.s32.totalorder %s142, %s145
      %p154 = scmp.eq.s32.totalorder %s22, 1
      %p155 = por %p153, %p154
      %p156 = scmp.ne.s32.totalorder %s145, %s146
      %p157 = scmp.eq.s32.totalorder %s22, 0
      %p158 = por %p156, %p157
      %p159 = scmp.ne.s32.totalorder %s145, %s146
      %p160 = scmp.eq.s32.totalorder %s23, 1
      %p161 = por %p159, %p160
      %p163 = scmp.ne.s32.totalorder %s146, %s162
      %p164 = scmp.eq.s32.totalorder %s23, 0
      %p165 = por %p163, %p164
      %s166 = ssub.s32 %s24, %s36
      %p167 = scmp.eq.s32.totalorder %s166, 0
      %s169 = sadd.s32 %s168, 1
      %s170 = scalar_select %p167, %s168, %s169
      %p173 = pneg %p167
      %p174 = scmp.eq.s32.totalorder %s17, 1
      %p175 = por %p173, %p174
      %p176 = scmp.ne.s32.totalorder %s168, %s171
      %p177 = scmp.eq.s32.totalorder %s17, 0
      %p178 = por %p176, %p177
      %p179 = scmp.ne.s32.totalorder %s168, %s171
      %p180 = scmp.eq.s32.totalorder %s22, 1
      %p181 = por %p179, %p180
      %p182 = scmp.ne.s32.totalorder %s171, %s172
      %p183 = scmp.eq.s32.totalorder %s22, 0
      %p184 = por %p182, %p183
      %p185 = scmp.ne.s32.totalorder %s171, %s172
      %p186 = scmp.eq.s32.totalorder %s23, 1
      %p187 = por %p185, %p186
      %p189 = scmp.ne.s32.totalorder %s172, %s188
      %p190 = scmp.eq.s32.totalorder %s23, 0
      %p191 = por %p189, %p190
      %s192 = ssub.s32 %s24, %s36
      %p193 = scmp.eq.s32.totalorder %s192, 0
      %s195 = sadd.s32 %s194, 1
      %s196 = scalar_select %p193, %s194, %s195
      %p199 = pneg %p193
      %p200 = scmp.eq.s32.totalorder %s17, 1
      %p201 = por %p199, %p200
      %p202 = scmp.ne.s32.totalorder %s194, %s197
      %p203 = scmp.eq.s32.totalorder %s17, 0
      %p204 = por %p202, %p203
      %p205 = scmp.ne.s32.totalorder %s194, %s197
      %p206 = scmp.eq.s32.totalorder %s22, 1
      %p207 = por %p205, %p206
      %p208 = scmp.ne.s32.totalorder %s197, %s198
      %p209 = scmp.eq.s32.totalorder %s22, 0
      %p210 = por %p208, %p209
      %p211 = scmp.ne.s32.totalorder %s197, %s198
      %p212 = scmp.eq.s32.totalorder %s23, 1
      %p213 = por %p211, %p212
      %p215 = scmp.ne.s32.totalorder %s198, %s214
      %p216 = scmp.eq.s32.totalorder %s23, 0
      %p217 = por %p215, %p216
      %p218 = scmp.le.s32.totalorder 1, %s17
      %p219 = scmp.lt.s32.totalorder %s17, 3
      %p220 = pnand %p218, %p219
      %p221 = pneg %p220
      // Predicated region
      $region9: #{tpu_custom_call.1} parent=5 // pred_check
        _
      $region10: #{tpu_custom_call.1} parent=5 // pred_check_branch
        %223 = sbr.rel (%p220) target = $region12
      $region11: #{tpu_custom_call.1} parent=5 // pred_region
        %s224 = ssub.s32 %s17, 1
        // Predicated region
        $region13: #{tpu_custom_call.1} parent=11 // pred_check
          %p225 = pneg %p106
        $region14: #{tpu_custom_call.1} parent=11 // pred_check_branch
          %227 = sbr.rel (%p225) target = $region16
        $region15: #{tpu_custom_call.1} parent=11 // pred_region
          %s229 = ssub.s32 256, 256
          %230 = vsyncadd [#allocation5], %s229
          %s231 = sshll.u32 [#allocation4], 4
          %s232 = int_to_ptr.vmem [resolvable:$true] %s231
          %237 = dma.hbm_to_vmem [thread:$0]  %s2, 256, %s232, [#allocation5], 128, 128, 8
        $region16: #{tpu_custom_call.1} parent=11 // pred_fallthru
          _
      $region12: #{tpu_custom_call.1} parent=5 // pred_fallthru
        _
      %p238 = scmp.lt.s32.totalorder %s17, 2
      // Predicated region
      $region17: #{tpu_custom_call.1} parent=5 // pred_check
        %p239 = pneg %p238
      $region18: #{tpu_custom_call.1} parent=5 // pred_check_branch
        %241 = sbr.rel (%p239) target = $region20
      $region19: #{tpu_custom_call.1} parent=5 // pred_region
        // Predicated region
        $region21: #{tpu_custom_call.1} parent=19 // pred_check
          %p242 = pneg %p51
        $region22: #{tpu_custom_call.1} parent=19 // pred_check_branch
          %244 = sbr.rel (%p242) target = $region24
        $region23: #{tpu_custom_call.1} parent=19 // pred_region
          %s245 = sand.u32 %s41, 1
          %s246 = scalar_lea.sflag [#allocation3], %s245
          %s247 = sand.u32 %s41, 1
          %s248 = smul.addr %s247, 4
          %s249 = scalar_lea.vmem [#allocation2], %s248
          %s250 = sadd.s32 %s24, %s25
          %s252 = ssub.s32 64, 64
          %253 = vsyncadd %s246, %s252
          %s254 = smul.addr %s250, 64
          %s255 = scalar_lea.hbm %s0, %s254
          %s257 = sshll.u32 %s249, 4
          %s258 = int_to_ptr.vmem [resolvable:$true] %s257
          %260 = dma.hbm_to_vmem [thread:$0]  %s255, 64, %s258, %s246
        $region24: #{tpu_custom_call.1} parent=19 // pred_fallthru
          _
        // Predicated region
        $region25: #{tpu_custom_call.1} parent=19 // pred_check
          %p261 = pneg %p79
        $region26: #{tpu_custom_call.1} parent=19 // pred_check_branch
          %263 = sbr.rel (%p261) target = $region28
        $region27: #{tpu_custom_call.1} parent=19 // pred_region
          %s264 = sadd.s32 %s24, %s25
          %p265 = scmp.lt.s32.totalorder %s264, 1
          %s266 = scalar_select %p265, %s264, 1
          %s267 = scalar_lea.vmem %s1, %s266
          %s268 = sadd.s32 %s24, %s25
        $region28: #{tpu_custom_call.1} parent=19 // pred_fallthru
          _
      $region20: #{tpu_custom_call.1} parent=5 // pred_fallthru
        _
      %p269 = scmp.le.s32.totalorder 1, %s17
      %p270 = scmp.lt.s32.totalorder %s17, 3
      %p271 = pnand %p269, %p270
      %p272 = pneg %p271
      // Predicated region
      $region29: #{tpu_custom_call.1} parent=5 // pred_check
        _
      $region30: #{tpu_custom_call.1} parent=5 // pred_check_branch
        %274 = sbr.rel (%p271) target = $region32
      $region31: #{tpu_custom_call.1} parent=5 // pred_region
        %s275 = ssub.s32 %s17, 1
        %s276 = sand.u32 %s44, 1
        %s277 = scalar_lea.sflag [#allocation3], %s276
        %s278 = sand.u32 %s44, 1
        %s279 = smul.addr %s278, 4
        %s280 = scalar_lea.vmem [#allocation2], %s279
        // Predicated region
        $region33: #{tpu_custom_call.1} parent=31 // pred_check
          %p281 = pneg %p57
        $region34: #{tpu_custom_call.1} parent=31 // pred_check_branch
          %283 = sbr.rel (%p281) target = $region36
        $region35: #{tpu_custom_call.1} parent=31 // pred_region
          %284 = dma.done %s277, 64
        $region36: #{tpu_custom_call.1} parent=31 // pred_fallthru
          _
        // Predicated region
        $region37: #{tpu_custom_call.1} parent=31 // pred_check
          %p285 = pneg %p106
        $region38: #{tpu_custom_call.1} parent=31 // pred_check_branch
          %287 = sbr.rel (%p285) target = $region40
        $region39: #{tpu_custom_call.1} parent=31 // pred_region
          %288 = dma.done [#allocation5], 256
        $region40: #{tpu_custom_call.1} parent=31 // pred_fallthru
          _
        %s289 = sand.u32 %s44, 1
        %s290 = scalar_lea.sflag [#allocation3], %s289
        %s291 = sand.u32 %s44, 1
        %s292 = smul.addr %s291, 4
        %s293 = scalar_lea.vmem [#allocation2], %s292
        %p294 = pneg %p57
        %p295 = pneg %p54
        %s296 = sadd.s32 %s26, %s27
        %p297 = scmp.lt.s32.totalorder %s296, 1
        %s298 = scalar_select %p297, %s296, 1
        %s299 = scalar_lea.vmem %s1, %s298
        %p300 = pneg %p85
        %p301 = pneg %p82
        %p302 = pneg %p106
        %p303 = pneg %p103
        %p304 = pneg %p132
        %p305 = pneg %p129
        %p306 = scmp.lt.s32.totalorder %s26, 1
        %s307 = scalar_select %p306, %s26, 1
        %s308 = smul.addr %s307, 4
        %s309 = scalar_lea.vmem %s3, %s308
        %p310 = pneg %p158
        %p311 = pneg %p155
        %p312 = scmp.lt.s32.totalorder %s26, 1
        %s313 = scalar_select %p312, %s26, 1
        %s314 = smul.addr %s313, 4
        %s315 = scalar_lea.vmem %s4, %s314
        %p316 = pneg %p184
        %p317 = pneg %p181
        %p318 = scmp.lt.s32.totalorder %s26, 1
        %s319 = scalar_select %p318, %s26, 1
        %s320 = smul.addr %s319, 4
        %s321 = scalar_lea.vmem %s5, %s320
        %p322 = pneg %p210
        %p323 = pneg %p207
        %p324 = scmp.lt.s32.totalorder %s26, 1
        %s325 = scalar_select %p324, %s26, 1
        %s326 = smul.addr %s325, 4
        %s327 = scalar_lea.vmem %s6, %s326
        %s328 = sadd.s32 %s26, %s27
        %s329 = sadd.s32 %s26, %s27
        %p330 = scmp.lt.s32.totalorder %s329, 1
        %s331 = scalar_select %p330, %s329, 1
        %s332 = scalar_lea.vmem %s1, %s331
        %s333 = sadd.s32 %s26, %s27
        %p334 = scmp.lt.s32.totalorder %s26, 1
        %s335 = scalar_select %p334, %s26, 1
        %s336 = smul.addr %s335, 4
        %s337 = scalar_lea.vmem %s3, %s336
        %p338 = scmp.lt.s32.totalorder %s26, 1
        %s339 = scalar_select %p338, %s26, 1
        %s340 = smul.addr %s339, 4
        %s341 = scalar_lea.vmem %s4, %s340
        %p342 = scmp.lt.s32.totalorder %s26, 1
        %s343 = scalar_select %p342, %s26, 1
        %s344 = smul.addr %s343, 4
        %s345 = scalar_lea.vmem %s5, %s344
        %p346 = scmp.lt.s32.totalorder %s26, 1
        %s347 = scalar_select %p346, %s26, 1
        %s348 = smul.addr %s347, 4
        %s349 = scalar_lea.vmem %s6, %s348
        %p351 = scmp.eq.s32.totalorder %s27, 0
        // Predicated region
        $region41: #{tpu_custom_call.1} parent=31 // pred_check
          %p352 = pneg %p351
        $region42: #{tpu_custom_call.1} parent=31 // pred_check_branch
          %354 = sbr.rel (%p352) target = $region44
        $region43: #{tpu_custom_call.1} parent=31 // pred_region
          %vm355 = vcmask 124928
          %356 = vst.msk [vmem:[%s337] sm:$0x7] %vm355, 0.0
          %357 = vst.msk [vmem:[%s341] sm:$0x7] %vm355, 0.0
          %vm358 = vcmask 2048
          %359 = vst.msk [vmem:[%s345] sm:$0x7] %vm358, 0.0
          %360 = vst.msk [vmem:[%s349] sm:$0x7] %vm358, -1e+30
        $region44: #{tpu_custom_call.1} parent=31 // pred_fallthru
          _
        %v361 = vld [vmem:[%s280] sm:$0x1]
        %v362 = vld [vmem:[%s280 + $0x1] sm:$0x1]
        %v363 = vld [vmem:[%s280 + $0x2] sm:$0x1]
        %v364 = vlaneseq
        %v365 = vshrl.u32 %v364, 7
        %v366 = vlaneseq
        %v367 = vshrl.u32 %v366, 7
        %v368 = vsub.s32 0, %v367
        %v369 = vrot.slane %v363, %v368
        %vm370 = vcmp.eq.s32.totalorder %v365, %v369
        %v371 = vsel %vm370, 1, 0
        %v372 = vcvt.s32.f32 %v371
        %v373 = vpack.c.bf16 %v372, %v372
        %v374 = vadd.s32 %v365, 8
        %v375 = vadd.s32 %v365, 16
        %v376 = vadd.s32 %v365, 24
        %v377 = vadd.s32 %v365, 32
        %v378 = vlaneseq
        %v379 = vshrl.u32 %v378, 7
        %v380 = vsub.s32 0, %v379
        %v381 = vrot.slane %v361, %v380
        %vm382 = vcmp.eq.s32.totalorder %v365, %v381
        %vm383 = vcmp.eq.s32.totalorder %v374, %v381
        %vm384 = vcmp.eq.s32.totalorder %v375, %v381
        %vm385 = vcmp.eq.s32.totalorder %v376, %v381
        %vm386 = vcmp.eq.s32.totalorder %v377, %v381
        %v387 = vadd.s32 %v362, 16
        %v388 = vlaneseq
        %v389 = vshrl.u32 %v388, 7
        %v390 = vsub.s32 0, %v389
        %v391 = vrot.slane %v387, %v390
        %vm392 = vcmp.eq.s32.totalorder %v365, %v391
        %vm393 = vcmp.eq.s32.totalorder %v374, %v391
        %vm394 = vcmp.eq.s32.totalorder %v375, %v391
        %vm395 = vcmp.eq.s32.totalorder %v376, %v391
        %vm396 = vcmp.eq.s32.totalorder %v377, %v391
        %vm397 = vmor %vm382, %vm392
        %vm398 = vmor %vm383, %vm393
        %vm399 = vmor %vm384, %vm394
        %vm400 = vmor %vm385, %vm395
        %vm401 = vmor %vm386, %vm396
        %vm402 = vcmp.eq.s32.totalorder %v365, 32
        %vm403 = vcmp.eq.s32.totalorder %v374, 32
        %vm404 = vcmp.eq.s32.totalorder %v375, 32
        %vm405 = vcmp.eq.s32.totalorder %v376, 32
        %vm406 = vcmp.eq.s32.totalorder %v377, 32
        %vm407 = vmor %vm397, %vm402
        %vm408 = vmor %vm398, %vm403
        %vm409 = vmor %vm399, %vm404
        %vm410 = vmor %vm400, %vm405
        %vm411 = vmor %vm401, %vm406
        %v412 = vsel %vm407, 1, 0
        %v413 = vsel %vm408, 1, 0
        %v414 = vsel %vm409, 1, 0
        %v415 = vsel %vm410, 1, 0
        %v416 = vsel %vm411, 1, 0
        %v417 = vcvt.s32.f32 %v412
        %v418 = vcvt.s32.f32 %v413
        %v419 = vcvt.s32.f32 %v414
        %v420 = vcvt.s32.f32 %v415
        %v421 = vcvt.s32.f32 %v416
        %v422 = vpack.c.bf16 %v418, %v417
        %v423 = vpack.c.bf16 %v420, %v419
        %v424 = vpack.c.bf16 %v421, %v421
        %425 = vmatprep.subr.bf16.mxu0 0
        %426 = vmatpush1.bf16.xpose.msra.mxu0 %v422
        %427 = vmatprep.subr.bf16.mxu0 0
        %428 = vmatpush1.bf16.xpose.msra.mxu0 %v423
        %429 = vmatprep.subr.bf16.mxu0 0
        %430 = vmatpush1.bf16.xpose.msra.mxu0 %v424
        %431 = vmatprep.subr.bf16.mxu0 0
        %432 = vmatpush1.bf16.xpose.msra.mxu0 0
        %433 = vmatprep.subr.bf16.mxu0 0
        %434 = vmatpush1.bf16.xpose.msra.mxu0 0
        %435 = vmatprep.subr.bf16.mxu0 0
        %436 = vmatpush1.bf16.xpose.msra.mxu0 0
        %437 = vmatprep.subr.bf16.mxu0 0
        %438 = vmatpush1.bf16.xpose.msra.mxu0 0
        %439 = vmatprep.subr.bf16.mxu0 0
        %440 = vmatpush1.bf16.xpose.msra.mxu0 0
        %441 = vmatprep.subr.bf16.mxu0 0
        %442 = vmatpush1.bf16.xpose.msra.mxu0 0
        %443 = vmatprep.subr.bf16.mxu0 0
        %444 = vmatpush1.bf16.xpose.msra.mxu0 0
        %445 = vmatprep.subr.bf16.mxu0 0
        %446 = vmatpush1.bf16.xpose.msra.mxu0 0
        %447 = vmatprep.subr.bf16.mxu0 0
        %448 = vmatpush1.bf16.xpose.msra.mxu0 0
        %449 = vmatprep.subr.bf16.mxu0 0
        %450 = vmatpush1.bf16.xpose.msra.mxu0 0
        %451 = vmatprep.subr.bf16.mxu0 0
        %452 = vmatpush1.bf16.xpose.msra.mxu0 0
        %453 = vmatprep.subr.bf16.mxu0 0
        %454 = vmatpush1.bf16.xpose.msra.mxu0 0
        %455 = vmatprep.subr.bf16.mxu0 0
        %456 = vmatpush1.bf16.xpose.msra.mxu0 0
        %457 = vmatprep.mubr.bf16.mxu0 0
        %458 = vmatmul.mubr.bf16.gmra.mrb[0].mxu0 %v373
        %v459 = vpop.f32.mrb[0].mxu0
        %v460 = vadd.f32 0.0, %v459
        %v461 = vpop.f32.mrb[0].mxu0
        %v462 = vpop.f32.mrb[0].mxu0
        %v463 = vpop.f32.mrb[0].mxu0
        %464 = vdwg.mxu0
        %v465 = vld [vmem:[%s337] sm:$0x7]
        %v466 = vld [vmem:[#allocation4] sm:$0xff]
        %v467 = vld [vmem:[#allocation4 + $0x8] sm:$0xff]
        %vm468 = vcmask 130048
        %v470 = vsel %vm468, %v460, 0
        %472 = vmatprep.subr.mxu0 0.0
        %473 = vmatpush1.msra.mxu0 %v466
        %474 = vmatprep.subr.mxu0 0.0
        %475 = vmatpush1.msra.mxu0 %v467
        %476 = vmatprep.subr.mxu0 0.0
        %477 = vmatpush1.msra.mxu0 0.0
        %478 = vmatprep.subr.mxu0 0.0
        %479 = vmatpush1.msra.mxu0 0.0
        %480 = vmatprep.subr.mxu0 0.0
        %481 = vmatpush1.msra.mxu0 0.0
        %482 = vmatprep.subr.mxu0 0.0
        %483 = vmatpush1.msra.mxu0 0.0
        %484 = vmatprep.subr.mxu0 0.0
        %485 = vmatpush1.msra.mxu0 0.0
        %486 = vmatprep.subr.mxu0 0.0
        %487 = vmatpush1.msra.mxu0 0.0
        %488 = vmatprep.subr.mxu0 0.0
        %489 = vmatpush1.msra.mxu0 0.0
        %490 = vmatprep.subr.mxu0 0.0
        %491 = vmatpush1.msra.mxu0 0.0
        %492 = vmatprep.subr.mxu0 0.0
        %493 = vmatpush1.msra.mxu0 0.0
        %494 = vmatprep.subr.mxu0 0.0
        %495 = vmatpush1.msra.mxu0 0.0
        %496 = vmatprep.subr.mxu0 0.0
        %497 = vmatpush1.msra.mxu0 0.0
        %498 = vmatprep.subr.mxu0 0.0
        %499 = vmatpush1.msra.mxu0 0.0
        %500 = vmatprep.subr.mxu0 0.0
        %501 = vmatpush1.msra.mxu0 0.0
        %502 = vmatprep.subr.mxu0 0.0
        %503 = vmatpush1.msra.mxu0 0.0
        %504 = vmatprep.subr.mxu0 0.0
        %505 = vmatpush1.msra.mxu0 0.0
        %506 = vmatprep.subr.mxu0 0.0
        %507 = vmatpush1.msra.mxu0 0.0
        %508 = vmatprep.subr.mxu0 0.0
        %509 = vmatpush1.msra.mxu0 0.0
        %510 = vmatprep.subr.mxu0 0.0
        %511 = vmatpush1.msra.mxu0 0.0
        %512 = vmatprep.subr.mxu0 0.0
        %513 = vmatpush1.msra.mxu0 0.0
        %514 = vmatprep.subr.mxu0 0.0
        %515 = vmatpush1.msra.mxu0 0.0
        %516 = vmatprep.subr.mxu0 0.0
        %517 = vmatpush1.msra.mxu0 0.0
        %518 = vmatprep.subr.mxu0 0.0
        %519 = vmatpush1.msra.mxu0 0.0
        %520 = vmatprep.subr.mxu0 0.0
        %521 = vmatpush1.msra.mxu0 0.0
        %522 = vmatprep.subr.mxu0 0.0
        %523 = vmatpush1.msra.mxu0 0.0
        %524 = vmatprep.subr.mxu0 0.0
        %525 = vmatpush1.msra.mxu0 0.0
        %526 = vmatprep.subr.mxu0 0.0
        %527 = vmatpush1.msra.mxu0 0.0
        %528 = vmatprep.subr.mxu0 0.0
        %529 = vmatpush1.msra.mxu0 0.0
        %530 = vmatprep.subr.mxu0 0.0
        %531 = vmatpush1.msra.mxu0 0.0
        %532 = vmatprep.subr.mxu0 0.0
        %533 = vmatpush1.msra.mxu0 0.0
        %534 = vmatprep.subr.mxu0 0.0
        %535 = vmatpush1.msra.mxu0 0.0
        %536 = vmatprep.mubr.f32.mxu0 0.0
        %537 = vmatmul.mubr.f32.gmra.mrb[0].mxu0 %v470
        %v538 = vpop.f32.mrb[0].mxu0
        %v539 = vadd.f32 0.0, %v538
        %v540 = vpop.f32.mrb[0].mxu0
        %541 = vdwg.mxu0
        %v542 = vadd.f32 %v465, %v539
        %vm543 = vcmask 124928
        %544 = vst.msk [vmem:[%s337] sm:$0x7] %vm543, %v542
        %v545 = vld [vmem:[%s341] sm:$0x7]
        %v546 = vld [vmem:[#allocation4] sm:$0xff]
        %v547 = vld [vmem:[#allocation4 + $0x8] sm:$0xff]
        %548 = vrot.lane.b32.xlu0 %v460, 112
        %v549 = vpop.permute.xlu0 %548
        %v550 = vsel %vm468, %v549, 0
        %552 = vmatprep.subr.mxu0 0.0
        %553 = vmatpush1.msra.mxu0 %v546
        %554 = vmatprep.subr.mxu0 0.0
        %555 = vmatpush1.msra.mxu0 %v547
        %556 = vmatprep.subr.mxu0 0.0
        %557 = vmatpush1.msra.mxu0 0.0
        %558 = vmatprep.subr.mxu0 0.0
        %559 = vmatpush1.msra.mxu0 0.0
        %560 = vmatprep.subr.mxu0 0.0
        %561 = vmatpush1.msra.mxu0 0.0
        %562 = vmatprep.subr.mxu0 0.0
        %563 = vmatpush1.msra.mxu0 0.0
        %564 = vmatprep.subr.mxu0 0.0
        %565 = vmatpush1.msra.mxu0 0.0
        %566 = vmatprep.subr.mxu0 0.0
        %567 = vmatpush1.msra.mxu0 0.0
        %568 = vmatprep.subr.mxu0 0.0
        %569 = vmatpush1.msra.mxu0 0.0
        %570 = vmatprep.subr.mxu0 0.0
        %571 = vmatpush1.msra.mxu0 0.0
        %572 = vmatprep.subr.mxu0 0.0
        %573 = vmatpush1.msra.mxu0 0.0
        %574 = vmatprep.subr.mxu0 0.0
        %575 = vmatpush1.msra.mxu0 0.0
        %576 = vmatprep.subr.mxu0 0.0
        %577 = vmatpush1.msra.mxu0 0.0
        %578 = vmatprep.subr.mxu0 0.0
        %579 = vmatpush1.msra.mxu0 0.0
        %580 = vmatprep.subr.mxu0 0.0
        %581 = vmatpush1.msra.mxu0 0.0
        %582 = vmatprep.subr.mxu0 0.0
        %583 = vmatpush1.msra.mxu0 0.0
        %584 = vmatprep.subr.mxu0 0.0
        %585 = vmatpush1.msra.mxu0 0.0
        %586 = vmatprep.subr.mxu0 0.0
        %587 = vmatpush1.msra.mxu0 0.0
        %588 = vmatprep.subr.mxu0 0.0
        %589 = vmatpush1.msra.mxu0 0.0
        %590 = vmatprep.subr.mxu0 0.0
        %591 = vmatpush1.msra.mxu0 0.0
        %592 = vmatprep.subr.mxu0 0.0
        %593 = vmatpush1.msra.mxu0 0.0
        %594 = vmatprep.subr.mxu0 0.0
        %595 = vmatpush1.msra.mxu0 0.0
        %596 = vmatprep.subr.mxu0 0.0
        %597 = vmatpush1.msra.mxu0 0.0
        %598 = vmatprep.subr.mxu0 0.0
        %599 = vmatpush1.msra.mxu0 0.0
        %600 = vmatprep.subr.mxu0 0.0
        %601 = vmatpush1.msra.mxu0 0.0
        %602 = vmatprep.subr.mxu0 0.0
        %603 = vmatpush1.msra.mxu0 0.0
        %604 = vmatprep.subr.mxu0 0.0
        %605 = vmatpush1.msra.mxu0 0.0
        %606 = vmatprep.subr.mxu0 0.0
        %607 = vmatpush1.msra.mxu0 0.0
        %608 = vmatprep.subr.mxu0 0.0
        %609 = vmatpush1.msra.mxu0 0.0
        %610 = vmatprep.subr.mxu0 0.0
        %611 = vmatpush1.msra.mxu0 0.0
        %612 = vmatprep.subr.mxu0 0.0
        %613 = vmatpush1.msra.mxu0 0.0
        %614 = vmatprep.subr.mxu0 0.0
        %615 = vmatpush1.msra.mxu0 0.0
        %616 = vmatprep.mubr.f32.mxu0 0.0
        %617 = vmatmul.mubr.f32.gmra.mrb[0].mxu0 %v550
        %v618 = vpop.f32.mrb[0].mxu0
        %v619 = vadd.f32 0.0, %v618
        %v620 = vpop.f32.mrb[0].mxu0
        %621 = vdwg.mxu0
        %v622 = vadd.f32 %v545, %v619
        %623 = vst.msk [vmem:[%s341] sm:$0x7] %vm543, %v622
        %v624 = vld [vmem:[%s345] sm:$0x7]
        %625 = vrot.lane.b32.xlu0 %v460, 96
        %v626 = vpop.permute.xlu0 %625
        %v628 = vadd.f32 %v624, %v626
        %vm629 = vcmask 2048
        %630 = vst.msk [vmem:[%s345] sm:$0x7] %vm629, %v628
        %v631 = vld [vmem:[%s332] sm:$0x1]
        %v633 = vlaneseq
        %v634 = vshrl.u32 %v633, 7
        %v635 = vsub.s32 0, %v634
        %v636 = vrot.slane %v631, %v635
        %v638 = vsel %vm370, %v636, -1e+30
        %v639 = vld [vmem:[%s349] sm:$0x7]
        %vm640 = vcmask 1042432
        %v641 = vsel %vm640, %v638, -inf
        %642 = vmax.xlane.f32.xlu0 %v641
        %v643 = vpop.xlane.xlu0 %642
        %v644 = vmax.f32 %v639, %v643
        %645 = vst.msk [vmem:[%s349] sm:$0x7] %vm629, %v644
        %p646 = scmp.lt.s32.totalorder %s26, 1
        %s647 = scalar_select %p646, %s26, 1
        %s648 = smul.addr %s647, 4
        %s649 = scalar_lea.vmem %s3, %s648
        %p650 = scmp.lt.s32.totalorder %s26, 1
        %s651 = scalar_select %p650, %s26, 1
        %s652 = smul.addr %s651, 4
        %s653 = scalar_lea.vmem %s4, %s652
        %p654 = scmp.lt.s32.totalorder %s26, 1
        %s655 = scalar_select %p654, %s26, 1
        %s656 = smul.addr %s655, 4
        %s657 = scalar_lea.vmem %s5, %s656
        %p658 = scmp.lt.s32.totalorder %s26, 1
        %s659 = scalar_select %p658, %s26, 1
        %s660 = smul.addr %s659, 4
        %s661 = scalar_lea.vmem %s6, %s660
        // Predicated region
        $region45: #{tpu_custom_call.1} parent=31 // pred_check
          %p662 = pneg %p129
        $region46: #{tpu_custom_call.1} parent=31 // pred_check_branch
          %664 = sbr.rel (%p662) target = $region48
        $region47: #{tpu_custom_call.1} parent=31 // pred_region
          _
        $region48: #{tpu_custom_call.1} parent=31 // pred_fallthru
          _
        // Predicated region
        $region49: #{tpu_custom_call.1} parent=31 // pred_check
          %p665 = pneg %p155
        $region50: #{tpu_custom_call.1} parent=31 // pred_check_branch
          %667 = sbr.rel (%p665) target = $region52
        $region51: #{tpu_custom_call.1} parent=31 // pred_region
          _
        $region52: #{tpu_custom_call.1} parent=31 // pred_fallthru
          _
        // Predicated region
        $region53: #{tpu_custom_call.1} parent=31 // pred_check
          %p668 = pneg %p181
        $region54: #{tpu_custom_call.1} parent=31 // pred_check_branch
          %670 = sbr.rel (%p668) target = $region56
        $region55: #{tpu_custom_call.1} parent=31 // pred_region
          _
        $region56: #{tpu_custom_call.1} parent=31 // pred_fallthru
          _
        // Predicated region
        $region57: #{tpu_custom_call.1} parent=31 // pred_check
          %p671 = pneg %p207
        $region58: #{tpu_custom_call.1} parent=31 // pred_check_branch
          %673 = sbr.rel (%p671) target = $region60
        $region59: #{tpu_custom_call.1} parent=31 // pred_region
          _
        $region60: #{tpu_custom_call.1} parent=31 // pred_fallthru
          _
      $region32: #{tpu_custom_call.1} parent=5 // pred_fallthru
        _
      %p674 = scmp.le.s32.totalorder 2, %s17
      // Predicated region
      $region61: #{tpu_custom_call.1} parent=5 // pred_check
        %p675 = pneg %p674
      $region62: #{tpu_custom_call.1} parent=5 // pred_check_branch
        %677 = sbr.rel (%p675) target = $region64
      $region63: #{tpu_custom_call.1} parent=5 // pred_region
        %s678 = ssub.s32 %s17, 2
        // Predicated region
        $region65: #{tpu_custom_call.1} parent=63 // pred_check
          %p679 = pneg %p135
        $region66: #{tpu_custom_call.1} parent=63 // pred_check_branch
          %681 = sbr.rel (%p679) target = $region68
        $region67: #{tpu_custom_call.1} parent=63 // pred_region
          %p682 = scmp.lt.s32.totalorder %s28, 1
          %s683 = scalar_select %p682, %s28, 1
          %s684 = smul.addr %s683, 4
          %s685 = scalar_lea.vmem %s3, %s684
        $region68: #{tpu_custom_call.1} parent=63 // pred_fallthru
          _
        // Predicated region
        $region69: #{tpu_custom_call.1} parent=63 // pred_check
          %p686 = pneg %p161
        $region70: #{tpu_custom_call.1} parent=63 // pred_check_branch
          %688 = sbr.rel (%p686) target = $region72
        $region71: #{tpu_custom_call.1} parent=63 // pred_region
          %p689 = scmp.lt.s32.totalorder %s28, 1
          %s690 = scalar_select %p689, %s28, 1
          %s691 = smul.addr %s690, 4
          %s692 = scalar_lea.vmem %s4, %s691
        $region72: #{tpu_custom_call.1} parent=63 // pred_fallthru
          _
        // Predicated region
        $region73: #{tpu_custom_call.1} parent=63 // pred_check
          %p693 = pneg %p187
        $region74: #{tpu_custom_call.1} parent=63 // pred_check_branch
          %695 = sbr.rel (%p693) target = $region76
        $region75: #{tpu_custom_call.1} parent=63 // pred_region
          %p696 = scmp.lt.s32.totalorder %s28, 1
          %s697 = scalar_select %p696, %s28, 1
          %s698 = smul.addr %s697, 4
          %s699 = scalar_lea.vmem %s5, %s698
        $region76: #{tpu_custom_call.1} parent=63 // pred_fallthru
          _
        // Predicated region
        $region77: #{tpu_custom_call.1} parent=63 // pred_check
          %p700 = pneg %p213
        $region78: #{tpu_custom_call.1} parent=63 // pred_check_branch
          %702 = sbr.rel (%p700) target = $region80
        $region79: #{tpu_custom_call.1} parent=63 // pred_region
          %p703 = scmp.lt.s32.totalorder %s28, 1
          %s704 = scalar_select %p703, %s28, 1
          %s705 = smul.addr %s704, 4
          %s706 = scalar_lea.vmem %s6, %s705
        $region80: #{tpu_custom_call.1} parent=63 // pred_fallthru
          _
      $region64: #{tpu_custom_call.1} parent=5 // pred_fallthru
        _
    $region6: #{tpu_custom_call.1} parent=1 // loop_footer
      %s21 = sadd.s32 1, %s17
    $region7: #{tpu_custom_call.1} parent=1 // loop_footer_branch
      %16 = sbr.rel target = $region3
    $region8: #{tpu_custom_call.1} parent=1 // loop_exit
      _
    %707 = vsyncpa [#allocation3], 1
    %s708 = scalar_lea.sflag [#allocation3], 1
    %709 = vsyncpa %s708, 1
    %710 = vsyncpa [#allocation5], 1

</llo_original>
